<compile_context>
chip_gen: v7x
topology: tpu7x:2x2x1
jax: 0.10.0
libtpu: 0.0.40
codegen_flags: <defaults>
</compile_context>

<pallas_src>
import jax
import jax.numpy as jnp
from jax.experimental import pallas as pl
from jax.experimental.pallas import tpu as pltpu


IN_F, H1, H2, OUT_F = 310, 100, 50, 3
OUT_PAD = 8  # padded output lanes (full-array last dim, so (8,128) rule is satisfied)


def mlp_kernel(x_ref, w1_ref, b1_ref, w2_ref, b2_ref, w3_ref, b3_ref, o_ref):
    x = x_ref[...]

    # Layer 1: (tile_m, 310) @ (310, 100), f32 accumulation on the MXU.
    h = jnp.dot(x, w1_ref[...], preferred_element_type=jnp.float32)
    h = jnp.maximum(h + b1_ref[...], 0.0)          # bias + ReLU in f32 (VPU)

    # Layer 2: (tile_m, 100) @ (100, 50)
    h = jnp.dot(h.astype(w2_ref.dtype), w2_ref[...],
                preferred_element_type=jnp.float32)
    h = jnp.maximum(h + b2_ref[...], 0.0)

    # Layer 3: (tile_m, 50) @ (50, OUT_PAD)
    h = jnp.dot(h.astype(w3_ref.dtype), w3_ref[...],
                preferred_element_type=jnp.float32)
    o_ref[...] = (h + b3_ref[...]).astype(o_ref.dtype)


def _round_up(v, m):
    return ((v + m - 1) // m) * m


def mlp_forward(x, w1, b1, w2, b2, w3, b3, *, tile_m=4096):
    """Forward pass of the MLP.

    x:  (N, 310)  f32 or bf16 (bf16 recommended: halves the dominant HBM stream)
    w1: (310, 100), b1: (1, 100)
    w2: (100, 50),  b2: (1, 50)
    w3: (50, 3),    b3: (1, 3)
    returns (N, 3) f32
    """
    n = x.shape[0]

    # Zero-pad layer-3 weights/bias to OUT_PAD output lanes.
    w3p = jnp.zeros((w3.shape[0], OUT_PAD), w3.dtype).at[:, :OUT_F].set(w3)
    b3p = jnp.zeros((1, OUT_PAD), b3.dtype).at[:, :OUT_F].set(b3)

    # Batch tile: multiple of 8 sublanes, no bigger than the padded batch.
    n_pad = _round_up(n, 8)
    tile_m = max(8, min(_round_up(tile_m, 8), n_pad))
    # Guarantee >= 2 grid steps when the batch allows, so the parallel batch
    # axis feeds both TensorCores on v7x (no-op on single-TC v5e/v6e).
    if pl.cdiv(n, tile_m) < 2 and n_pad >= 16:
        tile_m = _round_up(pl.cdiv(n, 2), 8)
    grid = (pl.cdiv(n, tile_m),)

    # Advisory cost hint reflecting the real (8-lane) output traffic.
    x_bytes = x.dtype.itemsize
    w_bytes = (w1.size * w1.dtype.itemsize + b1.size * b1.dtype.itemsize
               + w2.size * w2.dtype.itemsize + b2.size * b2.dtype.itemsize
               + w3p.size * w3p.dtype.itemsize + b3p.size * b3p.dtype.itemsize)
    cost = pl.CostEstimate(
        flops=2 * n * (IN_F * H1 + H1 * H2 + H2 * OUT_PAD),
        transcendentals=0,
        bytes_accessed=n * (IN_F * x_bytes + OUT_PAD * 4) + w_bytes,
    )

    out_padded = pl.pallas_call(
        mlp_kernel,
        out_shape=jax.ShapeDtypeStruct((n, OUT_PAD), jnp.float32),
        grid=grid,
        in_specs=[
            pl.BlockSpec((tile_m, IN_F), lambda i: (i, 0)),   # streamed x
            pl.BlockSpec(w1.shape, lambda i: (0, 0)),          # VMEM-resident weights
            pl.BlockSpec(b1.shape, lambda i: (0, 0)),
            pl.BlockSpec(w2.shape, lambda i: (0, 0)),
            pl.BlockSpec(b2.shape, lambda i: (0, 0)),
            pl.BlockSpec(w3p.shape, lambda i: (0, 0)),
            pl.BlockSpec(b3p.shape, lambda i: (0, 0)),
        ],
        out_specs=pl.BlockSpec((tile_m, OUT_PAD), lambda i: (i, 0)),
        compiler_params=pltpu.CompilerParams(
            dimension_semantics=("parallel",)),
        cost_estimate=cost,
    )(x, w1, b1, w2, b2, w3p, b3p)

    return out_padded[:, :OUT_F]


def mlp_ref(x, w1, b1, w2, b2, w3, b3):
    """Plain-JAX reference of the same forward pass."""
    h = jnp.maximum(jnp.dot(x, w1, preferred_element_type=jnp.float32) + b1, 0.0)
    h = jnp.maximum(
        jnp.dot(h.astype(w2.dtype), w2, preferred_element_type=jnp.float32) + b2,
        0.0)
    return jnp.dot(h.astype(w3.dtype), w3,
                   preferred_element_type=jnp.float32) + b3


def init_linear_params(key, fan_in, fan_out):
    """PyTorch nn.Linear-style init: U[-1/sqrt(fan_in), 1/sqrt(fan_in)].

    Weight returned as (fan_in, fan_out) so the kernel computes x @ W.
    """
    kw, kb = jax.random.split(key)
    bound = 1.0 / jnp.sqrt(float(fan_in))
    w = jax.random.uniform(kw, (fan_in, fan_out), jnp.float32, -bound, bound)
    b = jax.random.uniform(kb, (1, fan_out), jnp.float32, -bound, bound)
    return w, b


# TODO(synk): the training pieces of the PyTorch module (Adam optimizer,
# CrossEntropyLoss, fit loop, softmax/argmax eval) are host-side training
# logic, not part of the forward pass, and are intentionally not translated.

if __name__ == "__main__":
    key = jax.random.PRNGKey(0)
    kx, k1, k2, k3 = jax.random.split(key, 4)

    # Batch deliberately NOT a multiple of the eventual tile so the ragged
    # last-tile path (padded input block + masked output write) is exercised,
    # and small enough that the ">=2 grid steps" clamp kicks in (tile_m=104,
    # grid=(2,)) — both TensorCores get work on v7x.
    batch = 200
    x = jax.random.normal(kx, (batch, IN_F), jnp.float32)

    w1, b1 = init_linear_params(k1, IN_F, H1)
    w2, b2 = init_linear_params(k2, H1, H2)
    w3, b3 = init_linear_params(k3, H2, OUT_F)

    # f32 path (matches PyTorch nn.Linear numerics).
    out = mlp_forward(x, w1, b1, w2, b2, w3, b3)
    out = jax.block_until_ready(out)
    ref = mlp_ref(x, w1, b1, w2, b2, w3, b3)
    assert out.shape == (batch, OUT_F)
    assert jnp.allclose(out, ref, atol=1e-4, rtol=1e-4), \
        float(jnp.max(jnp.abs(out - ref)))

    # bf16 streaming path (recommended default for deployment, and the right
    # route on v5e/v6e): halves HBM traffic for x and feeds bf16 operands to
    # the MXU; accumulation and the bias/ReLU epilogue stay in f32.
    xb = x.astype(jnp.bfloat16)
    w1b, w2b, w3b = (w.astype(jnp.bfloat16) for w in (w1, w2, w3))
    out_bf16 = mlp_forward(xb, w1b, b1, w2b, b2, w3b, b3)
    out_bf16 = jax.block_until_ready(out_bf16)
    ref_bf16 = mlp_ref(xb, w1b, b1, w2b, b2, w3b, b3)
    assert out_bf16.shape == (batch, OUT_F)
    assert jnp.allclose(out_bf16, ref_bf16, atol=5e-2, rtol=5e-2)

    print("KERNEL_OK")
</pallas_src>

<mosaic_0001>
module attributes {stable_mosaic.version = 11 : i64} {
  func.func @mlp_kernel(%arg0: i32, %arg1: memref<104x310xf32, #tpu.memory_space<vmem>>, %arg2: memref<310x100xf32, #tpu.memory_space<vmem>>, %arg3: memref<1x100xf32, #tpu.memory_space<vmem>>, %arg4: memref<100x50xf32, #tpu.memory_space<vmem>>, %arg5: memref<1x50xf32, #tpu.memory_space<vmem>>, %arg6: memref<50x8xf32, #tpu.memory_space<vmem>>, %arg7: memref<1x8xf32, #tpu.memory_space<vmem>>, %arg8: memref<104x8xf32, #tpu.memory_space<vmem>>) attributes {dimension_semantics = [#tpu.dimension_semantics<parallel>], iteration_bounds = array<i64: 2>, scalar_prefetch = 0 : i64, scratch_operands = 0 : i64, tpu.core_type = #tpu.core_type<tc>, window_params = [{transform_indices = @transform_0, window_bounds = array<i64: 104, 310>}, {pipeline_mode = #tpu.pipeline_mode<synchronous>, transform_indices = @transform_1, window_bounds = array<i64: 310, 100>}, {pipeline_mode = #tpu.pipeline_mode<synchronous>, transform_indices = @transform_2, window_bounds = array<i64: 1, 100>}, {pipeline_mode = #tpu.pipeline_mode<synchronous>, transform_indices = @transform_3, window_bounds = array<i64: 100, 50>}, {pipeline_mode = #tpu.pipeline_mode<synchronous>, transform_indices = @transform_4, window_bounds = array<i64: 1, 50>}, {pipeline_mode = #tpu.pipeline_mode<synchronous>, transform_indices = @transform_5, window_bounds = array<i64: 50, 8>}, {pipeline_mode = #tpu.pipeline_mode<synchronous>, transform_indices = @transform_6, window_bounds = array<i64: 1, 8>}, {transform_indices = @transform_7, window_bounds = array<i64: 104, 8>}]} {
    %c0 = arith.constant 0 : index
    %c0_0 = arith.constant 0 : index
    %0 = vector.load %arg1[%c0, %c0_0] : memref<104x310xf32, #tpu.memory_space<vmem>>, vector<104x310xf32>
    %c0_1 = arith.constant 0 : index
    %c0_2 = arith.constant 0 : index
    %1 = vector.load %arg2[%c0_1, %c0_2] : memref<310x100xf32, #tpu.memory_space<vmem>>, vector<310x100xf32>
    %cst = arith.constant dense<0.000000e+00> : vector<104x100xf32>
    %2 = tpu.matmul %0, %1, %cst {dimension_numbers = #tpu.dot_dimension_numbers<[1], [0], [0], [1], [0, 0, 1, 1], [], []>} : vector<104x310xf32>, vector<310x100xf32>, vector<104x100xf32> -> vector<104x100xf32>
    %c0_3 = arith.constant 0 : index
    %c0_4 = arith.constant 0 : index
    %3 = vector.load %arg3[%c0_3, %c0_4] : memref<1x100xf32, #tpu.memory_space<vmem>>, vector<1x100xf32>
    %4 = vector.broadcast %3 : vector<1x100xf32> to vector<104x100xf32>
    %5 = arith.addf %2, %4 : vector<104x100xf32>
    %cst_5 = arith.constant 0.000000e+00 : f32
    %6 = vector.broadcast %cst_5 : f32 to vector<104x100xf32>
    %7 = arith.maximumf %5, %6 : vector<104x100xf32>
    %c0_6 = arith.constant 0 : index
    %c0_7 = arith.constant 0 : index
    %8 = vector.load %arg4[%c0_6, %c0_7] : memref<100x50xf32, #tpu.memory_space<vmem>>, vector<100x50xf32>
    %cst_8 = arith.constant dense<0.000000e+00> : vector<104x50xf32>
    %9 = tpu.matmul %7, %8, %cst_8 {dimension_numbers = #tpu.dot_dimension_numbers<[1], [0], [0], [1], [0, 0, 1, 1], [], []>} : vector<104x100xf32>, vector<100x50xf32>, vector<104x50xf32> -> vector<104x50xf32>
    %c0_9 = arith.constant 0 : index
    %c0_10 = arith.constant 0 : index
    %10 = vector.load %arg5[%c0_9, %c0_10] : memref<1x50xf32, #tpu.memory_space<vmem>>, vector<1x50xf32>
    %11 = vector.broadcast %10 : vector<1x50xf32> to vector<104x50xf32>
    %12 = arith.addf %9, %11 : vector<104x50xf32>
    %cst_11 = arith.constant 0.000000e+00 : f32
    %13 = vector.broadcast %cst_11 : f32 to vector<104x50xf32>
    %14 = arith.maximumf %12, %13 : vector<104x50xf32>
    %c0_12 = arith.constant 0 : index
    %c0_13 = arith.constant 0 : index
    %15 = vector.load %arg6[%c0_12, %c0_13] : memref<50x8xf32, #tpu.memory_space<vmem>>, vector<50x8xf32>
    %cst_14 = arith.constant dense<0.000000e+00> : vector<104x8xf32>
    %16 = tpu.matmul %14, %15, %cst_14 {dimension_numbers = #tpu.dot_dimension_numbers<[1], [0], [0], [1], [0, 0, 1, 1], [], []>} : vector<104x50xf32>, vector<50x8xf32>, vector<104x8xf32> -> vector<104x8xf32>
    %c0_15 = arith.constant 0 : index
    %c0_16 = arith.constant 0 : index
    %17 = vector.load %arg7[%c0_15, %c0_16] : memref<1x8xf32, #tpu.memory_space<vmem>>, vector<1x8xf32>
    %18 = vector.broadcast %17 : vector<1x8xf32> to vector<104x8xf32>
    %19 = arith.addf %16, %18 : vector<104x8xf32>
    %c0_17 = arith.constant 0 : index
    %c0_18 = arith.constant 0 : index
    %20 = vector.load %arg8[%c0_17, %c0_18] : memref<104x8xf32, #tpu.memory_space<vmem>>, vector<104x8xf32>
    tpu.vector_store %arg8[%c0_17, %c0_18], %19 {strides = array<i32>} : memref<104x8xf32, #tpu.memory_space<vmem>>, vector<104x8xf32>,
    return
  }
  func.func @transform_0(%arg0: i32) -> (i32, i32) {
    %c0_i32 = arith.constant 0 : i32
    %c0_i32_0 = arith.constant 0 : i32
    return %arg0, %c0_i32 : i32, i32
  }
  func.func @transform_1(%arg0: i32) -> (i32, i32) {
    %c0_i32 = arith.constant 0 : i32
    %c0_i32_0 = arith.constant 0 : i32
    %c0_i32_1 = arith.constant 0 : i32
    return %c0_i32, %c0_i32_0 : i32, i32
  }
  func.func @transform_2(%arg0: i32) -> (i32, i32) {
    %c0_i32 = arith.constant 0 : i32
    %c0_i32_0 = arith.constant 0 : i32
    %c0_i32_1 = arith.constant 0 : i32
    return %c0_i32, %c0_i32_0 : i32, i32
  }
  func.func @transform_3(%arg0: i32) -> (i32, i32) {
    %c0_i32 = arith.constant 0 : i32
    %c0_i32_0 = arith.constant 0 : i32
    %c0_i32_1 = arith.constant 0 : i32
    return %c0_i32, %c0_i32_0 : i32, i32
  }
  func.func @transform_4(%arg0: i32) -> (i32, i32) {
    %c0_i32 = arith.constant 0 : i32
    %c0_i32_0 = arith.constant 0 : i32
    %c0_i32_1 = arith.constant 0 : i32
    return %c0_i32, %c0_i32_0 : i32, i32
  }
  func.func @transform_5(%arg0: i32) -> (i32, i32) {
    %c0_i32 = arith.constant 0 : i32
    %c0_i32_0 = arith.constant 0 : i32
    %c0_i32_1 = arith.constant 0 : i32
    return %c0_i32, %c0_i32_0 : i32, i32
  }
  func.func @transform_6(%arg0: i32) -> (i32, i32) {
    %c0_i32 = arith.constant 0 : i32
    %c0_i32_0 = arith.constant 0 : i32
    %c0_i32_1 = arith.constant 0 : i32
    return %c0_i32, %c0_i32_0 : i32, i32
  }
  func.func @transform_7(%arg0: i32) -> (i32, i32) {
    %c0_i32 = arith.constant 0 : i32
    %c0_i32_0 = arith.constant 0 : i32
    return %arg0, %c0_i32 : i32, i32
  }
}

</mosaic_0001>

<llo_original>
// kernel: tpu_custom_call.1
$region0: #{tpu_custom_call.1}
  #allocation0 [shape = 'u32[]', space=smem, size = 0x4, offset = 0x4, fixed_abs, tag = 'smem constant byte address 0x4 - core index']
  #allocation1 [shape = 'u32[144,128]{1,0:T(1,128)}', space=vmem, size = 0x12000, scoped, tag = 'internal scratch']
  %s0 = inlined_call_operand.hbm [shape: f32[200,310], index: 0, kind: input, shape index: {}]
  %s1 = inlined_call_operand.hbm [shape: f32[310,100], index: 1, kind: input, shape index: {}]
  %s2 = inlined_call_operand.vmem [shape: f32[1,100], index: 2, kind: input, shape index: {}]
  %s3 = inlined_call_operand.vmem [shape: f32[100,50], index: 3, kind: input, shape index: {}]
  %s4 = inlined_call_operand.vmem [shape: f32[1,50], index: 4, kind: input, shape index: {}]
  %s5 = inlined_call_operand.vmem [shape: f32[50,8], index: 5, kind: input, shape index: {}]
  %s6 = inlined_call_operand.vmem [shape: f32[1,8], index: 6, kind: input, shape index: {}]
  %s7 = inlined_call_operand.vmem [shape: f32[200,8], index: 7, kind: output, shape index: {}]
  %s8 = sld [smem:[#allocation0]]
  $region117: #{tpu_custom_call.1} parent=0
    _
  %s10 = ssub.s32 1, %s8
  %s11 = scalar_select 0, %s10, %s8
  $region1: #{tpu_custom_call.1} parent=0
    #allocation2 [shape = 'u8[319488]{0}', space=vmem, size = 0x4e000, scoped, tag = 'input window, operand 0']
    #allocation3 [shape = 's32[2]{0}', space=sflag, size = 0x8, scoped, tag = 'scoped memory for tpu_custom_call.1']
    #allocation4 [shape = 'u8[159744]{0}', space=vmem, size = 0x27000, scoped, tag = 'input window, operand 1, single buffered']
    #allocation5 [shape = 's32[1]{0}', space=sflag, size = 0x4, scoped, tag = 'scoped memory for tpu_custom_call.1']
    #allocation6 [shape = 'u8[106496]{0}', space=vmem, size = 0x1a000, scoped, tag = 'output window, operand 0']
    %12 = vsyncpa [#allocation3], 0
    %s13 = scalar_lea.sflag [#allocation3], 1
    %14 = vsyncpa %s13, 0
    %15 = vsyncpa [#allocation5], 0
    loop: start=0, step=1, limit=4
    $region2: #{tpu_custom_call.1} parent=1 // loop_pre_header
      _
    $region3: #{tpu_custom_call.1} parent=1 // loop_header
      %s17 = sphi 0, %s21
      %p18 = scmp.ge.s32.totalorder %s17, 4
      %s27 = sphi 0, %s29
      %s30 = sphi 0, %s27
      %s31 = sphi 0, %s30
      %s47 = sphi 0, %s31
      %s51 = sphi 0, %s51
      %s53 = sphi 0, %s51
      %s54 = sphi 0, %s53
      %s68 = sphi 0, %s54
      %s72 = sphi 0, %s72
      %s74 = sphi 0, %s72
      %s75 = sphi 0, %s74
      %s89 = sphi 0, %s75
      %s93 = sphi 0, %s93
      %s95 = sphi 0, %s93
      %s96 = sphi 0, %s95
      %s110 = sphi 0, %s96
      %s114 = sphi 0, %s114
      %s116 = sphi 0, %s114
      %s117 = sphi 0, %s116
      %s131 = sphi 0, %s117
      %s135 = sphi 0, %s135
      %s137 = sphi 0, %s135
      %s138 = sphi 0, %s137
      %s152 = sphi 0, %s138
      %s156 = sphi 0, %s156
      %s158 = sphi 0, %s156
      %s159 = sphi 0, %s158
      %s173 = sphi 0, %s159
      %s179 = sphi 0, %s181
      %s182 = sphi 0, %s179
      %s183 = sphi 0, %s182
      %s199 = sphi 0, %s183
    $region4: #{tpu_custom_call.1} parent=1 // loop_header_branch
      %20 = sbr.rel (%p18) target = $region8
    $region5: #{tpu_custom_call.1} parent=1 // loop_body
      %s22 = ssub.s32 %s17, 1
      %s23 = ssub.s32 %s17, 2
      %s24 = sadd.s32 %s17, 1
      %s25 = ssub.s32 %s17, %s24
      %p26 = scmp.eq.s32.totalorder %s25, 0
      %s28 = sadd.s32 %s27, 1
      %s29 = scalar_select %p26, %s27, %s28
      %p32 = pneg %p26
      %p33 = scmp.eq.s32.totalorder %s17, 1
      %p34 = por %p32, %p33
      %p35 = scmp.ne.s32.totalorder %s27, %s30
      %p36 = scmp.eq.s32.totalorder %s17, 0
      %p37 = por %p35, %p36
      %p38 = scmp.ne.s32.totalorder %s27, %s30
      %p39 = scmp.eq.s32.totalorder %s22, 1
      %p40 = por %p38, %p39
      %p41 = scmp.ne.s32.totalorder %s30, %s31
      %p42 = scmp.eq.s32.totalorder %s22, 0
      %p43 = por %p41, %p42
      %p44 = scmp.ne.s32.totalorder %s30, %s31
      %p45 = scmp.eq.s32.totalorder %s23, 1
      %p46 = por %p44, %p45
      %p48 = scmp.ne.s32.totalorder %s31, %s47
      %p49 = scmp.eq.s32.totalorder %s23, 0
      %p50 = por %p48, %p49
      %s52 = sadd.s32 %s51, 1
      %p55 = scmp.eq.s32.totalorder %s17, 1
      %p56 = scmp.ne.s32.totalorder %s51, %s53
      %p57 = scmp.eq.s32.totalorder %s17, 0
      %p58 = por %p56, %p57
      %p59 = scmp.ne.s32.totalorder %s51, %s53
      %p60 = scmp.eq.s32.totalorder %s22, 1
      %p61 = por %p59, %p60
      %p62 = scmp.ne.s32.totalorder %s53, %s54
      %p63 = scmp.eq.s32.totalorder %s22, 0
      %p64 = por %p62, %p63
      %p65 = scmp.ne.s32.totalorder %s53, %s54
      %p66 = scmp.eq.s32.totalorder %s23, 1
      %p67 = por %p65, %p66
      %p69 = scmp.ne.s32.totalorder %s54, %s68
      %p70 = scmp.eq.s32.totalorder %s23, 0
      %p71 = por %p69, %p70
      %s73 = sadd.s32 %s72, 1
      %p76 = scmp.eq.s32.totalorder %s17, 1
      %p77 = scmp.ne.s32.totalorder %s72, %s74
      %p78 = scmp.eq.s32.totalorder %s17, 0
      %p79 = por %p77, %p78
      %p80 = scmp.ne.s32.totalorder %s72, %s74
      %p81 = scmp.eq.s32.totalorder %s22, 1
      %p82 = por %p80, %p81
      %p83 = scmp.ne.s32.totalorder %s74, %s75
      %p84 = scmp.eq.s32.totalorder %s22, 0
      %p85 = por %p83, %p84
      %p86 = scmp.ne.s32.totalorder %s74, %s75
      %p87 = scmp.eq.s32.totalorder %s23, 1
      %p88 = por %p86, %p87
      %p90 = scmp.ne.s32.totalorder %s75, %s89
      %p91 = scmp.eq.s32.totalorder %s23, 0
      %p92 = por %p90, %p91
      %s94 = sadd.s32 %s93, 1
      %p97 = scmp.eq.s32.totalorder %s17, 1
      %p98 = scmp.ne.s32.totalorder %s93, %s95
      %p99 = scmp.eq.s32.totalorder %s17, 0
      %p100 = por %p98, %p99
      %p101 = scmp.ne.s32.totalorder %s93, %s95
      %p102 = scmp.eq.s32.totalorder %s22, 1
      %p103 = por %p101, %p102
      %p104 = scmp.ne.s32.totalorder %s95, %s96
      %p105 = scmp.eq.s32.totalorder %s22, 0
      %p106 = por %p104, %p105
      %p107 = scmp.ne.s32.totalorder %s95, %s96
      %p108 = scmp.eq.s32.totalorder %s23, 1
      %p109 = por %p107, %p108
      %p111 = scmp.ne.s32.totalorder %s96, %s110
      %p112 = scmp.eq.s32.totalorder %s23, 0
      %p113 = por %p111, %p112
      %s115 = sadd.s32 %s114, 1
      %p118 = scmp.eq.s32.totalorder %s17, 1
      %p119 = scmp.ne.s32.totalorder %s114, %s116
      %p120 = scmp.eq.s32.totalorder %s17, 0
      %p121 = por %p119, %p120
      %p122 = scmp.ne.s32.totalorder %s114, %s116
      %p123 = scmp.eq.s32.totalorder %s22, 1
      %p124 = por %p122, %p123
      %p125 = scmp.ne.s32.totalorder %s116, %s117
      %p126 = scmp.eq.s32.totalorder %s22, 0
      %p127 = por %p125, %p126
      %p128 = scmp.ne.s32.totalorder %s116, %s117
      %p129 = scmp.eq.s32.totalorder %s23, 1
      %p130 = por %p128, %p129
      %p132 = scmp.ne.s32.totalorder %s117, %s131
      %p133 = scmp.eq.s32.totalorder %s23, 0
      %p134 = por %p132, %p133
      %s136 = sadd.s32 %s135, 1
      %p139 = scmp.eq.s32.totalorder %s17, 1
      %p140 = scmp.ne.s32.totalorder %s135, %s137
      %p141 = scmp.eq.s32.totalorder %s17, 0
      %p142 = por %p140, %p141
      %p143 = scmp.ne.s32.totalorder %s135, %s137
      %p144 = scmp.eq.s32.totalorder %s22, 1
      %p145 = por %p143, %p144
      %p146 = scmp.ne.s32.totalorder %s137, %s138
      %p147 = scmp.eq.s32.totalorder %s22, 0
      %p148 = por %p146, %p147
      %p149 = scmp.ne.s32.totalorder %s137, %s138
      %p150 = scmp.eq.s32.totalorder %s23, 1
      %p151 = por %p149, %p150
      %p153 = scmp.ne.s32.totalorder %s138, %s152
      %p154 = scmp.eq.s32.totalorder %s23, 0
      %p155 = por %p153, %p154
      %s157 = sadd.s32 %s156, 1
      %p160 = scmp.eq.s32.totalorder %s17, 1
      %p161 = scmp.ne.s32.totalorder %s156, %s158
      %p162 = scmp.eq.s32.totalorder %s17, 0
      %p163 = por %p161, %p162
      %p164 = scmp.ne.s32.totalorder %s156, %s158
      %p165 = scmp.eq.s32.totalorder %s22, 1
      %p166 = por %p164, %p165
      %p167 = scmp.ne.s32.totalorder %s158, %s159
      %p168 = scmp.eq.s32.totalorder %s22, 0
      %p169 = por %p167, %p168
      %p170 = scmp.ne.s32.totalorder %s158, %s159
      %p171 = scmp.eq.s32.totalorder %s23, 1
      %p172 = por %p170, %p171
      %p174 = scmp.ne.s32.totalorder %s159, %s173
      %p175 = scmp.eq.s32.totalorder %s23, 0
      %p176 = por %p174, %p175
      %s177 = ssub.s32 %s17, %s24
      %p178 = scmp.eq.s32.totalorder %s177, 0
      %s180 = sadd.s32 %s179, 1
      %s181 = scalar_select %p178, %s179, %s180
      %p184 = pneg %p178
      %p185 = scmp.eq.s32.totalorder %s17, 1
      %p186 = por %p184, %p185
      %p187 = scmp.ne.s32.totalorder %s179, %s182
      %p188 = scmp.eq.s32.totalorder %s17, 0
      %p189 = por %p187, %p188
      %p190 = scmp.ne.s32.totalorder %s179, %s182
      %p191 = scmp.eq.s32.totalorder %s22, 1
      %p192 = por %p190, %p191
      %p193 = scmp.ne.s32.totalorder %s182, %s183
      %p194 = scmp.eq.s32.totalorder %s22, 0
      %p195 = por %p193, %p194
      %p196 = scmp.ne.s32.totalorder %s182, %s183
      %p197 = scmp.eq.s32.totalorder %s23, 1
      %p198 = por %p196, %p197
      %p200 = scmp.ne.s32.totalorder %s183, %s199
      %p201 = scmp.eq.s32.totalorder %s23, 0
      %p202 = por %p200, %p201
      %p203 = scmp.le.s32.totalorder 1, %s17
      %p204 = scmp.lt.s32.totalorder %s17, 3
      %p205 = pnand %p203, %p204
      %p206 = pneg %p205
      // Predicated region
      $region9: #{tpu_custom_call.1} parent=5 // pred_check
        _
      $region10: #{tpu_custom_call.1} parent=5 // pred_check_branch
        %208 = sbr.rel (%p205) target = $region12
      $region11: #{tpu_custom_call.1} parent=5 // pred_region
        %s209 = ssub.s32 %s17, 1
        // Predicated region
        $region13: #{tpu_custom_call.1} parent=11 // pred_check
          %p210 = pneg %p64
        $region14: #{tpu_custom_call.1} parent=11 // pred_check_branch
          %212 = sbr.rel (%p210) target = $region16
        $region15: #{tpu_custom_call.1} parent=11 // pred_region
          %s214 = ssub.s32 4992, 4992
          %215 = vsyncadd [#allocation5], %s214
          %s216 = sshll.u32 [#allocation4], 4
          %s217 = int_to_ptr.vmem [resolvable:$true] %s216
          %222 = dma.hbm_to_vmem [thread:$0]  %s1, 4992, %s217, [#allocation5], 128, 128, 8
        $region16: #{tpu_custom_call.1} parent=11 // pred_fallthru
          _
        // Predicated region
        $region17: #{tpu_custom_call.1} parent=11 // pred_check
          %p223 = pneg %p85
        $region18: #{tpu_custom_call.1} parent=11 // pred_check_branch
          %225 = sbr.rel (%p223) target = $region20
        $region19: #{tpu_custom_call.1} parent=11 // pred_region
          _
        $region20: #{tpu_custom_call.1} parent=11 // pred_fallthru
          _
        // Predicated region
        $region21: #{tpu_custom_call.1} parent=11 // pred_check
          %p226 = pneg %p106
        $region22: #{tpu_custom_call.1} parent=11 // pred_check_branch
          %228 = sbr.rel (%p226) target = $region24
        $region23: #{tpu_custom_call.1} parent=11 // pred_region
          _
        $region24: #{tpu_custom_call.1} parent=11 // pred_fallthru
          _
        // Predicated region
        $region25: #{tpu_custom_call.1} parent=11 // pred_check
          %p229 = pneg %p127
        $region26: #{tpu_custom_call.1} parent=11 // pred_check_branch
          %231 = sbr.rel (%p229) target = $region28
        $region27: #{tpu_custom_call.1} parent=11 // pred_region
          _
        $region28: #{tpu_custom_call.1} parent=11 // pred_fallthru
          _
        // Predicated region
        $region29: #{tpu_custom_call.1} parent=11 // pred_check
          %p232 = pneg %p148
        $region30: #{tpu_custom_call.1} parent=11 // pred_check_branch
          %234 = sbr.rel (%p232) target = $region32
        $region31: #{tpu_custom_call.1} parent=11 // pred_region
          _
        $region32: #{tpu_custom_call.1} parent=11 // pred_fallthru
          _
        // Predicated region
        $region33: #{tpu_custom_call.1} parent=11 // pred_check
          %p235 = pneg %p169
        $region34: #{tpu_custom_call.1} parent=11 // pred_check_branch
          %237 = sbr.rel (%p235) target = $region36
        $region35: #{tpu_custom_call.1} parent=11 // pred_region
          _
        $region36: #{tpu_custom_call.1} parent=11 // pred_fallthru
          _
      $region12: #{tpu_custom_call.1} parent=5 // pred_fallthru
        _
      %p238 = scmp.lt.s32.totalorder %s17, 2
      // Predicated region
      $region37: #{tpu_custom_call.1} parent=5 // pred_check
        %p239 = pneg %p238
      $region38: #{tpu_custom_call.1} parent=5 // pred_check_branch
        %241 = sbr.rel (%p239) target = $region40
      $region39: #{tpu_custom_call.1} parent=5 // pred_region
        // Predicated region
        $region41: #{tpu_custom_call.1} parent=39 // pred_check
          %p242 = pneg %p37
        $region42: #{tpu_custom_call.1} parent=39 // pred_check_branch
          %244 = sbr.rel (%p242) target = $region44
        $region43: #{tpu_custom_call.1} parent=39 // pred_region
          %s245 = sand.u32 %s27, 1
          %s246 = scalar_lea.sflag [#allocation3], %s245
          %s247 = sand.u32 %s27, 1
          %s248 = smul.addr %s247, 312
          %s249 = scalar_lea.vmem [#allocation2], %s248
          %s250 = smul.u32 13, %s17
          %s251 = ssub.s32 25, %s250
          %p252 = scmp.lt.s32.totalorder %s251, 13
          %s253 = scalar_select %p252, %s251, 13
          %s254 = smul.u32 128, %s253
          %s255 = smul.u32 %s254, 3
          %s257 = ssub.s32 4992, %s255
          %258 = vsyncadd %s246, %s257
          %p259 = scmp.ne.s32.totalorder 0, %s255
          %s260 = smul.addr %s250, 3
          %s261 = smul.addr %s260, 128
          %s262 = scalar_lea.hbm %s0, %s261
          %s263 = smul.u32 24, %s253
          %s264 = sshll.u32 %s249, 4
          %s265 = int_to_ptr.vmem [resolvable:$true] %s264
          %s266 = sshll.u32 %s263, 4
          %270 = dma.hbm_to_vmem [thread:$0]  (%p259), %s262, %s266, %s265, %s246, 384, 384, 24
        $region44: #{tpu_custom_call.1} parent=39 // pred_fallthru
          _
      $region40: #{tpu_custom_call.1} parent=5 // pred_fallthru
        _
      %p271 = scmp.le.s32.totalorder 1, %s17
      %p272 = scmp.lt.s32.totalorder %s17, 3
      %p273 = pnand %p271, %p272
      %p274 = pneg %p273
      // Predicated region
      $region45: #{tpu_custom_call.1} parent=5 // pred_check
        _
      $region46: #{tpu_custom_call.1} parent=5 // pred_check_branch
        %276 = sbr.rel (%p273) target = $region48
      $region47: #{tpu_custom_call.1} parent=5 // pred_region
        %s277 = ssub.s32 %s17, 1
        %s278 = sand.u32 %s30, 1
        %s279 = scalar_lea.sflag [#allocation3], %s278
        %s280 = sand.u32 %s30, 1
        %s281 = smul.addr %s280, 312
        %s282 = scalar_lea.vmem [#allocation2], %s281
        // Predicated region
        $region49: #{tpu_custom_call.1} parent=47 // pred_check
          %p283 = pneg %p43
        $region50: #{tpu_custom_call.1} parent=47 // pred_check_branch
          %285 = sbr.rel (%p283) target = $region52
        $region51: #{tpu_custom_call.1} parent=47 // pred_region
          %286 = dma.done %s279, 4992
        $region52: #{tpu_custom_call.1} parent=47 // pred_fallthru
          _
        // Predicated region
        $region53: #{tpu_custom_call.1} parent=47 // pred_check
          %p287 = pneg %p64
        $region54: #{tpu_custom_call.1} parent=47 // pred_check_branch
          %289 = sbr.rel (%p287) target = $region56
        $region55: #{tpu_custom_call.1} parent=47 // pred_region
          %290 = dma.done [#allocation5], 4992
        $region56: #{tpu_custom_call.1} parent=47 // pred_fallthru
          _
        %s291 = sand.u32 %s30, 1
        %s292 = scalar_lea.sflag [#allocation3], %s291
        %s293 = sand.u32 %s30, 1
        %s294 = smul.addr %s293, 312
        %s295 = scalar_lea.vmem [#allocation2], %s294
        %p296 = pneg %p43
        %p297 = pneg %p40
        %p298 = pneg %p64
        %p299 = pneg %p61
        %p300 = pneg %p85
        %p301 = pneg %p82
        %p302 = pneg %p106
        %p303 = pneg %p103
        %p304 = pneg %p127
        %p305 = pneg %p124
        %p306 = pneg %p148
        %p307 = pneg %p145
        %p308 = pneg %p169
        %p309 = pneg %p166
        %p310 = pneg %p195
        %p311 = pneg %p192
        %s312 = sand.u32 %s182, 1
        %s313 = sand.u32 %s182, 1
        %s314 = smul.addr %s313, 104
        %s315 = scalar_lea.vmem [#allocation6], %s314
        %s316 = smul.u32 13, %s22
        %s317 = ssub.s32 25, %s316
        %p318 = scmp.lt.s32.totalorder %s317, 13
        %s319 = scalar_select %p318, %s317, 13
        %s320 = smul.u32 128, %s319
        %s321 = smul.u32 %s320, 3
        %s322 = smul.u32 13, %s22
        %s323 = ssub.s32 25, %s322
        %p324 = scmp.lt.s32.totalorder %s323, 13
        %s325 = scalar_select %p324, %s323, 13
        %s326 = smul.u32 128, %s325
        %v327 = vld [vmem:[%s282] sm:$0xff]
        %v328 = vld [vmem:[%s282 + $0x8] sm:$0xff]
        %v329 = vld [vmem:[%s282 + $0x10] sm:$0xff]
        %v330 = vld [vmem:[%s282 + $0x18] sm:$0xff]
        %v331 = vld [vmem:[%s282 + $0x20] sm:$0xff]
        %v332 = vld [vmem:[%s282 + $0x28] sm:$0xff]
        %v333 = vld [vmem:[%s282 + $0x30] sm:$0xff]
        %v334 = vld [vmem:[%s282 + $0x38] sm:$0xff]
        %v335 = vld [vmem:[%s282 + $0x40] sm:$0xff]
        %v336 = vld [vmem:[%s282 + $0x48] sm:$0xff]
        %v337 = vld [vmem:[%s282 + $0x50] sm:$0xff]
        %v338 = vld [vmem:[%s282 + $0x58] sm:$0xff]
        %v339 = vld [vmem:[%s282 + $0x60] sm:$0xff]
        %v340 = vld [vmem:[%s282 + $0x68] sm:$0xff]
        %v341 = vld [vmem:[%s282 + $0x70] sm:$0xff]
        %v342 = vld [vmem:[%s282 + $0x78] sm:$0xff]
        %v343 = vld [vmem:[%s282 + $0x80] sm:$0xff]
        %v344 = vld [vmem:[%s282 + $0x88] sm:$0xff]
        %v345 = vld [vmem:[%s282 + $0x90] sm:$0xff]
        %v346 = vld [vmem:[%s282 + $0x98] sm:$0xff]
        %v347 = vld [vmem:[%s282 + $0xa0] sm:$0xff]
        %v348 = vld [vmem:[%s282 + $0xa8] sm:$0xff]
        %v349 = vld [vmem:[%s282 + $0xb0] sm:$0xff]
        %v350 = vld [vmem:[%s282 + $0xb8] sm:$0xff]
        %v351 = vld [vmem:[%s282 + $0xc0] sm:$0xff]
        %v352 = vld [vmem:[%s282 + $0xc8] sm:$0xff]
        %v353 = vld [vmem:[%s282 + $0xd0] sm:$0xff]
        %v354 = vld [vmem:[%s282 + $0xd8] sm:$0xff]
        %v355 = vld [vmem:[%s282 + $0xe0] sm:$0xff]
        %v356 = vld [vmem:[%s282 + $0xe8] sm:$0xff]
        %v357 = vld [vmem:[%s282 + $0xf0] sm:$0xff]
        %v358 = vld [vmem:[%s282 + $0xf8] sm:$0xff]
        %v359 = vld [vmem:[%s282 + $0x100] sm:$0xff]
        %v360 = vld [vmem:[%s282 + $0x108] sm:$0xff]
        %v361 = vld [vmem:[%s282 + $0x110] sm:$0xff]
        %v362 = vld [vmem:[%s282 + $0x118] sm:$0xff]
        %v363 = vld [vmem:[%s282 + $0x120] sm:$0xff]
        %v364 = vld [vmem:[%s282 + $0x128] sm:$0xff]
        %v365 = vld [vmem:[%s282 + $0x130] sm:$0xff]
        %v366 = vld [vmem:[#allocation4] sm:$0xff]
        %v367 = vld [vmem:[#allocation4 + $0x8] sm:$0xff]
        %v368 = vld [vmem:[#allocation4 + $0x10] sm:$0xff]
        %v369 = vld [vmem:[#allocation4 + $0x18] sm:$0xff]
        %v370 = vld [vmem:[#allocation4 + $0x20] sm:$0xff]
        %v371 = vld [vmem:[#allocation4 + $0x28] sm:$0xff]
        %v372 = vld [vmem:[#allocation4 + $0x30] sm:$0xff]
        %v373 = vld [vmem:[#allocation4 + $0x38] sm:$0xff]
        %v374 = vld [vmem:[#allocation4 + $0x40] sm:$0xff]
        %v375 = vld [vmem:[#allocation4 + $0x48] sm:$0xff]
        %v376 = vld [vmem:[#allocation4 + $0x50] sm:$0xff]
        %v377 = vld [vmem:[#allocation4 + $0x58] sm:$0xff]
        %v378 = vld [vmem:[#allocation4 + $0x60] sm:$0xff]
        %v379 = vld [vmem:[#allocation4 + $0x68] sm:$0xff]
        %v380 = vld [vmem:[#allocation4 + $0x70] sm:$0xff]
        %v381 = vld [vmem:[#allocation4 + $0x78] sm:$0xff]
        %v382 = vld [vmem:[#allocation4 + $0x80] sm:$0xff]
        %v383 = vld [vmem:[#allocation4 + $0x88] sm:$0xff]
        %v384 = vld [vmem:[#allocation4 + $0x90] sm:$0xff]
        %v385 = vld [vmem:[#allocation4 + $0x98] sm:$0xff]
        %v386 = vld [vmem:[#allocation4 + $0xa0] sm:$0xff]
        %v387 = vld [vmem:[#allocation4 + $0xa8] sm:$0xff]
        %v388 = vld [vmem:[#allocation4 + $0xb0] sm:$0xff]
        %v389 = vld [vmem:[#allocation4 + $0xb8] sm:$0xff]
        %v390 = vld [vmem:[#allocation4 + $0xc0] sm:$0xff]
        %v391 = vld [vmem:[#allocation4 + $0xc8] sm:$0xff]
        %v392 = vld [vmem:[#allocation4 + $0xd0] sm:$0xff]
        %v393 = vld [vmem:[#allocation4 + $0xd8] sm:$0xff]
        %v394 = vld [vmem:[#allocation4 + $0xe0] sm:$0xff]
        %v395 = vld [vmem:[#allocation4 + $0xe8] sm:$0xff]
        %v396 = vld [vmem:[#allocation4 + $0xf0] sm:$0xff]
        %v397 = vld [vmem:[#allocation4 + $0xf8] sm:$0xff]
        %v398 = vld [vmem:[#allocation4 + $0x100] sm:$0xff]
        %v399 = vld [vmem:[#allocation4 + $0x108] sm:$0xff]
        %v400 = vld [vmem:[#allocation4 + $0x110] sm:$0xff]
        %v401 = vld [vmem:[#allocation4 + $0x118] sm:$0xff]
        %v402 = vld [vmem:[#allocation4 + $0x120] sm:$0xff]
        %v403 = vld [vmem:[#allocation4 + $0x128] sm:$0xff]
        %v404 = vld [vmem:[#allocation4 + $0x130] sm:$0x3f]
        %v405 = vld [vmem:[%s2] sm:$0x1]
        %v407 = vlaneseq
        %v408 = vshrl.u32 %v407, 7
        %v409 = vsub.s32 0, %v408
        %v410 = vrot.slane %v405, %v409
        %vm412 = vcmask 441344
        %v414 = vsel %vm412, %v329, 0
        %v417 = vsel %vm412, %v332, 0
        %v420 = vsel %vm412, %v335, 0
        %v423 = vsel %vm412, %v338, 0
        %v426 = vsel %vm412, %v341, 0
        %v429 = vsel %vm412, %v344, 0
        %v432 = vsel %vm412, %v347, 0
        %v435 = vsel %vm412, %v350, 0
        %v438 = vsel %vm412, %v353, 0
        %v441 = vsel %vm412, %v356, 0
        %v444 = vsel %vm412, %v359, 0
        %v447 = vsel %vm412, %v362, 0
        %v450 = vsel %vm412, %v365, 0
        %vm452 = vcmask 1045504
        %v454 = vsel %vm452, %v404, 0
        %456 = vmatprep.subr.mxu0 0.0
        %457 = vmatpush1.msra.mxu0 %v366
        %458 = vmatprep.subr.mxu0 0.0
        %459 = vmatpush1.msra.mxu0 %v367
        %460 = vmatprep.subr.mxu0 0.0
        %461 = vmatpush1.msra.mxu0 %v368
        %462 = vmatprep.subr.mxu0 0.0
        %463 = vmatpush1.msra.mxu0 %v369
        %464 = vmatprep.subr.mxu0 0.0
        %465 = vmatpush1.msra.mxu0 %v370
        %466 = vmatprep.subr.mxu0 0.0
        %467 = vmatpush1.msra.mxu0 %v371
        %468 = vmatprep.subr.mxu0 0.0
        %469 = vmatpush1.msra.mxu0 %v372
        %470 = vmatprep.subr.mxu0 0.0
        %471 = vmatpush1.msra.mxu0 %v373
        %472 = vmatprep.subr.mxu0 0.0
        %473 = vmatpush1.msra.mxu0 %v374
        %474 = vmatprep.subr.mxu0 0.0
        %475 = vmatpush1.msra.mxu0 %v375
        %476 = vmatprep.subr.mxu0 0.0
        %477 = vmatpush1.msra.mxu0 %v376
        %478 = vmatprep.subr.mxu0 0.0
        %479 = vmatpush1.msra.mxu0 %v377
        %480 = vmatprep.subr.mxu0 0.0
        %481 = vmatpush1.msra.mxu0 %v378
        %482 = vmatprep.subr.mxu0 0.0
        %483 = vmatpush1.msra.mxu0 %v379
        %484 = vmatprep.subr.mxu0 0.0
        %485 = vmatpush1.msra.mxu0 %v380
        %486 = vmatprep.subr.mxu0 0.0
        %487 = vmatpush1.msra.mxu0 %v381
        %488 = vmatprep.subr.mxu0 0.0
        %489 = vmatpush1.msra.mxu0 %v382
        %490 = vmatprep.subr.mxu0 0.0
        %491 = vmatpush1.msra.mxu0 %v383
        %492 = vmatprep.subr.mxu0 0.0
        %493 = vmatpush1.msra.mxu0 %v384
        %494 = vmatprep.subr.mxu0 0.0
        %495 = vmatpush1.msra.mxu0 %v385
        %496 = vmatprep.subr.mxu0 0.0
        %497 = vmatpush1.msra.mxu0 %v386
        %498 = vmatprep.subr.mxu0 0.0
        %499 = vmatpush1.msra.mxu0 %v387
        %500 = vmatprep.subr.mxu0 0.0
        %501 = vmatpush1.msra.mxu0 %v388
        %502 = vmatprep.subr.mxu0 0.0
        %503 = vmatpush1.msra.mxu0 %v389
        %504 = vmatprep.subr.mxu0 0.0
        %505 = vmatpush1.msra.mxu0 %v390
        %506 = vmatprep.subr.mxu0 0.0
        %507 = vmatpush1.msra.mxu0 %v391
        %508 = vmatprep.subr.mxu0 0.0
        %509 = vmatpush1.msra.mxu0 %v392
        %510 = vmatprep.subr.mxu0 0.0
        %511 = vmatpush1.msra.mxu0 %v393
        %512 = vmatprep.subr.mxu0 0.0
        %513 = vmatpush1.msra.mxu0 %v394
        %514 = vmatprep.subr.mxu0 0.0
        %515 = vmatpush1.msra.mxu0 %v395
        %516 = vmatprep.subr.mxu0 0.0
        %517 = vmatpush1.msra.mxu0 %v396
        %518 = vmatprep.subr.mxu0 0.0
        %519 = vmatpush1.msra.mxu0 %v397
        %520 = vmatprep.mubr.f32.mxu0 %v328
        %521 = vmatmul.mubr.f32.gmra.mrb[0].mxu0 %v327
        %v522 = vpop.f32.mrb[0].mxu0
        %v523 = vadd.f32 %v410, %v522
        %v524 = vpop.f32.mrb[0].mxu0
        %525 = vmatprep.mubr.f32.mxu0 %v331
        %526 = vmatmul.mubr.f32.gmra.mrb[0].mxu0 %v330
        %v527 = vpop.f32.mrb[0].mxu0
        %v528 = vadd.f32 %v410, %v527
        %v529 = vpop.f32.mrb[0].mxu0
        %530 = vmatprep.mubr.f32.mxu0 %v334
        %531 = vmatmul.mubr.f32.gmra.mrb[0].mxu0 %v333
        %v532 = vpop.f32.mrb[0].mxu0
        %v533 = vadd.f32 %v410, %v532
        %v534 = vpop.f32.mrb[0].mxu0
        %535 = vmatprep.mubr.f32.mxu0 %v337
        %536 = vmatmul.mubr.f32.gmra.mrb[0].mxu0 %v336
        %v537 = vpop.f32.mrb[0].mxu0
        %v538 = vadd.f32 %v410, %v537
        %v539 = vpop.f32.mrb[0].mxu0
        %540 = vmatprep.mubr.f32.mxu0 %v340
        %541 = vmatmul.mubr.f32.gmra.mrb[0].mxu0 %v339
        %v542 = vpop.f32.mrb[0].mxu0
        %v543 = vadd.f32 %v410, %v542
        %v544 = vpop.f32.mrb[0].mxu0
        %545 = vmatprep.mubr.f32.mxu0 %v343
        %546 = vmatmul.mubr.f32.gmra.mrb[0].mxu0 %v342
        %v547 = vpop.f32.mrb[0].mxu0
        %v548 = vadd.f32 %v410, %v547
        %v549 = vpop.f32.mrb[0].mxu0
        %550 = vmatprep.mubr.f32.mxu0 %v346
        %551 = vmatmul.mubr.f32.gmra.mrb[0].mxu0 %v345
        %v552 = vpop.f32.mrb[0].mxu0
        %v553 = vadd.f32 %v410, %v552
        %v554 = vpop.f32.mrb[0].mxu0
        %555 = vmatprep.mubr.f32.mxu0 %v349
        %556 = vmatmul.mubr.f32.gmra.mrb[0].mxu0 %v348
        %v557 = vpop.f32.mrb[0].mxu0
        %v558 = vadd.f32 %v410, %v557
        %v559 = vpop.f32.mrb[0].mxu0
        %560 = vmatprep.mubr.f32.mxu0 %v352
        %561 = vmatmul.mubr.f32.gmra.mrb[0].mxu0 %v351
        %v562 = vpop.f32.mrb[0].mxu0
        %v563 = vadd.f32 %v410, %v562
        %v564 = vpop.f32.mrb[0].mxu0
        %565 = vmatprep.mubr.f32.mxu0 %v355
        %566 = vmatmul.mubr.f32.gmra.mrb[0].mxu0 %v354
        %v567 = vpop.f32.mrb[0].mxu0
        %v568 = vadd.f32 %v410, %v567
        %v569 = vpop.f32.mrb[0].mxu0
        %570 = vmatprep.mubr.f32.mxu0 %v358
        %571 = vmatmul.mubr.f32.gmra.mrb[0].mxu0 %v357
        %v572 = vpop.f32.mrb[0].mxu0
        %v573 = vadd.f32 %v410, %v572
        %v574 = vpop.f32.mrb[0].mxu0
        %575 = vmatprep.mubr.f32.mxu0 %v361
        %576 = vmatmul.mubr.f32.gmra.mrb[0].mxu0 %v360
        %v577 = vpop.f32.mrb[0].mxu0
        %v578 = vadd.f32 %v410, %v577
        %v579 = vpop.f32.mrb[0].mxu0
        %580 = vmatprep.mubr.f32.mxu0 %v364
        %581 = vmatmul.mubr.f32.gmra.mrb[0].mxu0 %v363
        %v582 = vpop.f32.mrb[0].mxu0
        %v583 = vadd.f32 %v410, %v582
        %v584 = vpop.f32.mrb[0].mxu0
        %585 = vdwg.mxu0
        %586 = vmatprep.subr.mxu0 0.0
        %587 = vmatpush1.msra.mxu0 %v398
        %588 = vmatprep.subr.mxu0 0.0
        %589 = vmatpush1.msra.mxu0 %v399
        %590 = vmatprep.subr.mxu0 0.0
        %591 = vmatpush1.msra.mxu0 %v400
        %592 = vmatprep.subr.mxu0 0.0
        %593 = vmatpush1.msra.mxu0 %v401
        %594 = vmatprep.subr.mxu0 0.0
        %595 = vmatpush1.msra.mxu0 %v402
        %596 = vmatprep.subr.mxu0 0.0
        %597 = vmatpush1.msra.mxu0 %v403
        %598 = vmatprep.subr.mxu0 0.0
        %599 = vmatpush1.msra.mxu0 %v454
        %600 = vmatprep.subr.mxu0 0.0
        %601 = vmatpush1.msra.mxu0 0.0
        %602 = vmatprep.subr.mxu0 0.0
        %603 = vmatpush1.msra.mxu0 0.0
        %604 = vmatprep.subr.mxu0 0.0
        %605 = vmatpush1.msra.mxu0 0.0
        %606 = vmatprep.subr.mxu0 0.0
        %607 = vmatpush1.msra.mxu0 0.0
        %608 = vmatprep.subr.mxu0 0.0
        %609 = vmatpush1.msra.mxu0 0.0
        %610 = vmatprep.subr.mxu0 0.0
        %611 = vmatpush1.msra.mxu0 0.0
        %612 = vmatprep.subr.mxu0 0.0
        %613 = vmatpush1.msra.mxu0 0.0
        %614 = vmatprep.subr.mxu0 0.0
        %615 = vmatpush1.msra.mxu0 0.0
        %616 = vmatprep.subr.mxu0 0.0
        %617 = vmatpush1.msra.mxu0 0.0
        %618 = vmatprep.subr.mxu0 0.0
        %619 = vmatpush1.msra.mxu0 0.0
        %620 = vmatprep.subr.mxu0 0.0
        %621 = vmatpush1.msra.mxu0 0.0
        %622 = vmatprep.subr.mxu0 0.0
        %623 = vmatpush1.msra.mxu0 0.0
        %624 = vmatprep.subr.mxu0 0.0
        %625 = vmatpush1.msra.mxu0 0.0
        %626 = vmatprep.subr.mxu0 0.0
        %627 = vmatpush1.msra.mxu0 0.0
        %628 = vmatprep.subr.mxu0 0.0
        %629 = vmatpush1.msra.mxu0 0.0
        %630 = vmatprep.subr.mxu0 0.0
        %631 = vmatpush1.msra.mxu0 0.0
        %632 = vmatprep.subr.mxu0 0.0
        %633 = vmatpush1.msra.mxu0 0.0
        %634 = vmatprep.subr.mxu0 0.0
        %635 = vmatpush1.msra.mxu0 0.0
        %636 = vmatprep.subr.mxu0 0.0
        %637 = vmatpush1.msra.mxu0 0.0
        %638 = vmatprep.subr.mxu0 0.0
        %639 = vmatpush1.msra.mxu0 0.0
        %640 = vmatprep.subr.mxu0 0.0
        %641 = vmatpush1.msra.mxu0 0.0
        %642 = vmatprep.subr.mxu0 0.0
        %643 = vmatpush1.msra.mxu0 0.0
        %644 = vmatprep.subr.mxu0 0.0
        %645 = vmatpush1.msra.mxu0 0.0
        %646 = vmatprep.subr.mxu0 0.0
        %647 = vmatpush1.msra.mxu0 0.0
        %648 = vmatprep.subr.mxu0 0.0
        %649 = vmatpush1.msra.mxu0 0.0
        %650 = vmatprep.mubr.f32.mxu0 0.0
        %651 = vmatmul.mubr.f32.gmra.mrb[0].mxu0 %v414
        %v652 = vpop.f32.mrb[0].mxu0
        %v653 = vadd.f32 %v523, %v652
        %v654 = vpop.f32.mrb[0].mxu0
        %655 = vmatprep.mubr.f32.mxu0 0.0
        %656 = vmatmul.mubr.f32.gmra.mrb[0].mxu0 %v417
        %v657 = vpop.f32.mrb[0].mxu0
        %v658 = vadd.f32 %v528, %v657
        %v659 = vpop.f32.mrb[0].mxu0
        %660 = vmatprep.mubr.f32.mxu0 0.0
        %661 = vmatmul.mubr.f32.gmra.mrb[0].mxu0 %v420
        %v662 = vpop.f32.mrb[0].mxu0
        %v663 = vadd.f32 %v533, %v662
        %v664 = vpop.f32.mrb[0].mxu0
        %665 = vmatprep.mubr.f32.mxu0 0.0
        %666 = vmatmul.mubr.f32.gmra.mrb[0].mxu0 %v423
        %v667 = vpop.f32.mrb[0].mxu0
        %v668 = vadd.f32 %v538, %v667
        %v669 = vpop.f32.mrb[0].mxu0
        %670 = vmatprep.mubr.f32.mxu0 0.0
        %671 = vmatmul.mubr.f32.gmra.mrb[0].mxu0 %v426
        %v672 = vpop.f32.mrb[0].mxu0
        %v673 = vadd.f32 %v543, %v672
        %v674 = vpop.f32.mrb[0].mxu0
        %675 = vmatprep.mubr.f32.mxu0 0.0
        %676 = vmatmul.mubr.f32.gmra.mrb[0].mxu0 %v429
        %v677 = vpop.f32.mrb[0].mxu0
        %v678 = vadd.f32 %v548, %v677
        %v679 = vpop.f32.mrb[0].mxu0
        %680 = vmatprep.mubr.f32.mxu0 0.0
        %681 = vmatmul.mubr.f32.gmra.mrb[0].mxu0 %v432
        %v682 = vpop.f32.mrb[0].mxu0
        %v683 = vadd.f32 %v553, %v682
        %v684 = vpop.f32.mrb[0].mxu0
        %685 = vmatprep.mubr.f32.mxu0 0.0
        %686 = vmatmul.mubr.f32.gmra.mrb[0].mxu0 %v435
        %v687 = vpop.f32.mrb[0].mxu0
        %v688 = vadd.f32 %v558, %v687
        %v689 = vpop.f32.mrb[0].mxu0
        %690 = vmatprep.mubr.f32.mxu0 0.0
        %691 = vmatmul.mubr.f32.gmra.mrb[0].mxu0 %v438
        %v692 = vpop.f32.mrb[0].mxu0
        %v693 = vadd.f32 %v563, %v692
        %v694 = vpop.f32.mrb[0].mxu0
        %695 = vmatprep.mubr.f32.mxu0 0.0
        %696 = vmatmul.mubr.f32.gmra.mrb[0].mxu0 %v441
        %v697 = vpop.f32.mrb[0].mxu0
        %v698 = vadd.f32 %v568, %v697
        %v699 = vpop.f32.mrb[0].mxu0
        %700 = vmatprep.mubr.f32.mxu0 0.0
        %701 = vmatmul.mubr.f32.gmra.mrb[0].mxu0 %v444
        %v702 = vpop.f32.mrb[0].mxu0
        %v703 = vadd.f32 %v573, %v702
        %v704 = vpop.f32.mrb[0].mxu0
        %705 = vmatprep.mubr.f32.mxu0 0.0
        %706 = vmatmul.mubr.f32.gmra.mrb[0].mxu0 %v447
        %v707 = vpop.f32.mrb[0].mxu0
        %v708 = vadd.f32 %v578, %v707
        %v709 = vpop.f32.mrb[0].mxu0
        %710 = vmatprep.mubr.f32.mxu0 0.0
        %711 = vmatmul.mubr.f32.gmra.mrb[0].mxu0 %v450
        %v712 = vpop.f32.mrb[0].mxu0
        %v713 = vadd.f32 %v583, %v712
        %v714 = vpop.f32.mrb[0].mxu0
        %715 = vdwg.mxu0
        %v716 = vmax.f32 %v653, 0.0
        %v717 = vmax.f32 %v658, 0.0
        %v718 = vmax.f32 %v663, 0.0
        %v719 = vmax.f32 %v668, 0.0
        %v720 = vmax.f32 %v673, 0.0
        %v721 = vmax.f32 %v678, 0.0
        %v722 = vmax.f32 %v683, 0.0
        %v723 = vmax.f32 %v688, 0.0
        %v724 = vmax.f32 %v693, 0.0
        %v725 = vmax.f32 %v698, 0.0
        %v726 = vmax.f32 %v703, 0.0
        %v727 = vmax.f32 %v708, 0.0
        %v728 = vmax.f32 %v713, 0.0
        %v729 = vld [vmem:[%s3] sm:$0xff]
        %v730 = vld [vmem:[%s3 + $0x8] sm:$0xff]
        %v731 = vld [vmem:[%s3 + $0x10] sm:$0xff]
        %v732 = vld [vmem:[%s3 + $0x18] sm:$0xff]
        %v733 = vld [vmem:[%s3 + $0x20] sm:$0xff]
        %v734 = vld [vmem:[%s3 + $0x28] sm:$0xff]
        %v735 = vld [vmem:[%s3 + $0x30] sm:$0xff]
        %v736 = vld [vmem:[%s3 + $0x38] sm:$0xff]
        %v737 = vld [vmem:[%s3 + $0x40] sm:$0xff]
        %v738 = vld [vmem:[%s3 + $0x48] sm:$0xff]
        %v739 = vld [vmem:[%s3 + $0x50] sm:$0xff]
        %v740 = vld [vmem:[%s3 + $0x58] sm:$0xff]
        %v741 = vld [vmem:[%s3 + $0x60] sm:$0xf]
        %v742 = vld [vmem:[%s4] sm:$0x1]
        %v744 = vlaneseq
        %v745 = vshrl.u32 %v744, 7
        %v746 = vsub.s32 0, %v745
        %v747 = vrot.slane %v742, %v746
        %vm749 = vcmask 818176
        %v751 = vsel %vm749, %v716, 0
        %v754 = vsel %vm749, %v717, 0
        %v757 = vsel %vm749, %v718, 0
        %v760 = vsel %vm749, %v719, 0
        %v763 = vsel %vm749, %v720, 0
        %v766 = vsel %vm749, %v721, 0
        %v769 = vsel %vm749, %v722, 0
        %v772 = vsel %vm749, %v723, 0
        %v775 = vsel %vm749, %v724, 0
        %v778 = vsel %vm749, %v725, 0
        %v781 = vsel %vm749, %v726, 0
        %v784 = vsel %vm749, %v727, 0
        %v787 = vsel %vm749, %v728, 0
        %vm789 = vcmask 1043456
        %v791 = vsel %vm789, %v741, 0
        %793 = vmatprep.subr.mxu0 0.0
        %794 = vmatpush1.msra.mxu0 %v729
        %795 = vmatprep.subr.mxu0 0.0
        %796 = vmatpush1.msra.mxu0 %v730
        %797 = vmatprep.subr.mxu0 0.0
        %798 = vmatpush1.msra.mxu0 %v731
        %799 = vmatprep.subr.mxu0 0.0
        %800 = vmatpush1.msra.mxu0 %v732
        %801 = vmatprep.subr.mxu0 0.0
        %802 = vmatpush1.msra.mxu0 %v733
        %803 = vmatprep.subr.mxu0 0.0
        %804 = vmatpush1.msra.mxu0 %v734
        %805 = vmatprep.subr.mxu0 0.0
        %806 = vmatpush1.msra.mxu0 %v735
        %807 = vmatprep.subr.mxu0 0.0
        %808 = vmatpush1.msra.mxu0 %v736
        %809 = vmatprep.subr.mxu0 0.0
        %810 = vmatpush1.msra.mxu0 %v737
        %811 = vmatprep.subr.mxu0 0.0
        %812 = vmatpush1.msra.mxu0 %v738
        %813 = vmatprep.subr.mxu0 0.0
        %814 = vmatpush1.msra.mxu0 %v739
        %815 = vmatprep.subr.mxu0 0.0
        %816 = vmatpush1.msra.mxu0 %v740
        %817 = vmatprep.subr.mxu0 0.0
        %818 = vmatpush1.msra.mxu0 %v791
        %819 = vmatprep.subr.mxu0 0.0
        %820 = vmatpush1.msra.mxu0 0.0
        %821 = vmatprep.subr.mxu0 0.0
        %822 = vmatpush1.msra.mxu0 0.0
        %823 = vmatprep.subr.mxu0 0.0
        %824 = vmatpush1.msra.mxu0 0.0
        %825 = vmatprep.subr.mxu0 0.0
        %826 = vmatpush1.msra.mxu0 0.0
        %827 = vmatprep.subr.mxu0 0.0
        %828 = vmatpush1.msra.mxu0 0.0
        %829 = vmatprep.subr.mxu0 0.0
        %830 = vmatpush1.msra.mxu0 0.0
        %831 = vmatprep.subr.mxu0 0.0
        %832 = vmatpush1.msra.mxu0 0.0
        %833 = vmatprep.subr.mxu0 0.0
        %834 = vmatpush1.msra.mxu0 0.0
        %835 = vmatprep.subr.mxu0 0.0
        %836 = vmatpush1.msra.mxu0 0.0
        %837 = vmatprep.subr.mxu0 0.0
        %838 = vmatpush1.msra.mxu0 0.0
        %839 = vmatprep.subr.mxu0 0.0
        %840 = vmatpush1.msra.mxu0 0.0
        %841 = vmatprep.subr.mxu0 0.0
        %842 = vmatpush1.msra.mxu0 0.0
        %843 = vmatprep.subr.mxu0 0.0
        %844 = vmatpush1.msra.mxu0 0.0
        %845 = vmatprep.subr.mxu0 0.0
        %846 = vmatpush1.msra.mxu0 0.0
        %847 = vmatprep.subr.mxu0 0.0
        %848 = vmatpush1.msra.mxu0 0.0
        %849 = vmatprep.subr.mxu0 0.0
        %850 = vmatpush1.msra.mxu0 0.0
        %851 = vmatprep.subr.mxu0 0.0
        %852 = vmatpush1.msra.mxu0 0.0
        %853 = vmatprep.subr.mxu0 0.0
        %854 = vmatpush1.msra.mxu0 0.0
        %855 = vmatprep.subr.mxu0 0.0
        %856 = vmatpush1.msra.mxu0 0.0
        %857 = vmatprep.mubr.f32.mxu0 0.0
        %858 = vmatmul.mubr.f32.gmra.mrb[0].mxu0 %v751
        %v859 = vpop.f32.mrb[0].mxu0
        %v860 = vadd.f32 %v747, %v859
        %v861 = vpop.f32.mrb[0].mxu0
        %862 = vmatprep.mubr.f32.mxu0 0.0
        %863 = vmatmul.mubr.f32.gmra.mrb[0].mxu0 %v754
        %v864 = vpop.f32.mrb[0].mxu0
        %v865 = vadd.f32 %v747, %v864
        %v866 = vpop.f32.mrb[0].mxu0
        %867 = vmatprep.mubr.f32.mxu0 0.0
        %868 = vmatmul.mubr.f32.gmra.mrb[0].mxu0 %v757
        %v869 = vpop.f32.mrb[0].mxu0
        %v870 = vadd.f32 %v747, %v869
        %v871 = vpop.f32.mrb[0].mxu0
        %872 = vmatprep.mubr.f32.mxu0 0.0
        %873 = vmatmul.mubr.f32.gmra.mrb[0].mxu0 %v760
        %v874 = vpop.f32.mrb[0].mxu0
        %v875 = vadd.f32 %v747, %v874
        %v876 = vpop.f32.mrb[0].mxu0
        %877 = vmatprep.mubr.f32.mxu0 0.0
        %878 = vmatmul.mubr.f32.gmra.mrb[0].mxu0 %v763
        %v879 = vpop.f32.mrb[0].mxu0
        %v880 = vadd.f32 %v747, %v879
        %v881 = vpop.f32.mrb[0].mxu0
        %882 = vmatprep.mubr.f32.mxu0 0.0
        %883 = vmatmul.mubr.f32.gmra.mrb[0].mxu0 %v766
        %v884 = vpop.f32.mrb[0].mxu0
        %v885 = vadd.f32 %v747, %v884
        %v886 = vpop.f32.mrb[0].mxu0
        %887 = vmatprep.mubr.f32.mxu0 0.0
        %888 = vmatmul.mubr.f32.gmra.mrb[0].mxu0 %v769
        %v889 = vpop.f32.mrb[0].mxu0
        %v890 = vadd.f32 %v747, %v889
        %v891 = vpop.f32.mrb[0].mxu0
        %892 = vmatprep.mubr.f32.mxu0 0.0
        %893 = vmatmul.mubr.f32.gmra.mrb[0].mxu0 %v772
        %v894 = vpop.f32.mrb[0].mxu0
        %v895 = vadd.f32 %v747, %v894
        %v896 = vpop.f32.mrb[0].mxu0
        %897 = vmatprep.mubr.f32.mxu0 0.0
        %898 = vmatmul.mubr.f32.gmra.mrb[0].mxu0 %v775
        %v899 = vpop.f32.mrb[0].mxu0
        %v900 = vadd.f32 %v747, %v899
        %v901 = vpop.f32.mrb[0].mxu0
        %902 = vmatprep.mubr.f32.mxu0 0.0
        %903 = vmatmul.mubr.f32.gmra.mrb[0].mxu0 %v778
        %v904 = vpop.f32.mrb[0].mxu0
        %v905 = vadd.f32 %v747, %v904
        %v906 = vpop.f32.mrb[0].mxu0
        %907 = vmatprep.mubr.f32.mxu0 0.0
        %908 = vmatmul.mubr.f32.gmra.mrb[0].mxu0 %v781
        %v909 = vpop.f32.mrb[0].mxu0
        %v910 = vadd.f32 %v747, %v909
        %v911 = vpop.f32.mrb[0].mxu0
        %912 = vmatprep.mubr.f32.mxu0 0.0
        %913 = vmatmul.mubr.f32.gmra.mrb[0].mxu0 %v784
        %v914 = vpop.f32.mrb[0].mxu0
        %v915 = vadd.f32 %v747, %v914
        %v916 = vpop.f32.mrb[0].mxu0
        %917 = vmatprep.mubr.f32.mxu0 0.0
        %918 = vmatmul.mubr.f32.gmra.mrb[0].mxu0 %v787
        %v919 = vpop.f32.mrb[0].mxu0
        %v920 = vadd.f32 %v747, %v919
        %v921 = vpop.f32.mrb[0].mxu0
        %922 = vdwg.mxu0
        %v923 = vmax.f32 %v860, 0.0
        %v924 = vmax.f32 %v865, 0.0
        %v925 = vmax.f32 %v870, 0.0
        %v926 = vmax.f32 %v875, 0.0
        %v927 = vmax.f32 %v880, 0.0
        %v928 = vmax.f32 %v885, 0.0
        %v929 = vmax.f32 %v890, 0.0
        %v930 = vmax.f32 %v895, 0.0
        %v931 = vmax.f32 %v900, 0.0
        %v932 = vmax.f32 %v905, 0.0
        %v933 = vmax.f32 %v910, 0.0
        %v934 = vmax.f32 %v915, 0.0
        %v935 = vmax.f32 %v920, 0.0
        %v936 = vld [vmem:[%s5] sm:$0xff]
        %v937 = vld [vmem:[%s5 + $0x8] sm:$0xff]
        %v938 = vld [vmem:[%s5 + $0x10] sm:$0xff]
        %v939 = vld [vmem:[%s5 + $0x18] sm:$0xff]
        %v940 = vld [vmem:[%s5 + $0x20] sm:$0xff]
        %v941 = vld [vmem:[%s5 + $0x28] sm:$0xff]
        %v942 = vld [vmem:[%s5 + $0x30] sm:$0x3]
        %v943 = vld [vmem:[%s6] sm:$0x1]
        %v945 = vlaneseq
        %v946 = vshrl.u32 %v945, 7
        %v947 = vsub.s32 0, %v946
        %v948 = vrot.slane %v943, %v947
        %vm950 = vcmask 408576
        %v952 = vsel %vm950, %v923, 0
        %v955 = vsel %vm950, %v924, 0
        %v958 = vsel %vm950, %v925, 0
        %v961 = vsel %vm950, %v926, 0
        %v964 = vsel %vm950, %v927, 0
        %v967 = vsel %vm950, %v928, 0
        %v970 = vsel %vm950, %v929, 0
        %v973 = vsel %vm950, %v930, 0
        %v976 = vsel %vm950, %v931, 0
        %v979 = vsel %vm950, %v932, 0
        %v982 = vsel %vm950, %v933, 0
        %v985 = vsel %vm950, %v934, 0
        %v988 = vsel %vm950, %v935, 0
        %vm990 = vcmask 1041408
        %v992 = vsel %vm990, %v942, 0
        %994 = vmatprep.subr.mxu0 0.0
        %995 = vmatpush1.msra.mxu0 %v936
        %996 = vmatprep.subr.mxu0 0.0
        %997 = vmatpush1.msra.mxu0 %v937
        %998 = vmatprep.subr.mxu0 0.0
        %999 = vmatpush1.msra.mxu0 %v938
        %1000 = vmatprep.subr.mxu0 0.0
        %1001 = vmatpush1.msra.mxu0 %v939
        %1002 = vmatprep.subr.mxu0 0.0
        %1003 = vmatpush1.msra.mxu0 %v940
        %1004 = vmatprep.subr.mxu0 0.0
        %1005 = vmatpush1.msra.mxu0 %v941
        %1006 = vmatprep.subr.mxu0 0.0
        %1007 = vmatpush1.msra.mxu0 %v992
        %1008 = vmatprep.subr.mxu0 0.0
        %1009 = vmatpush1.msra.mxu0 0.0
        %1010 = vmatprep.subr.mxu0 0.0
        %1011 = vmatpush1.msra.mxu0 0.0
        %1012 = vmatprep.subr.mxu0 0.0
        %1013 = vmatpush1.msra.mxu0 0.0
        %1014 = vmatprep.subr.mxu0 0.0
        %1015 = vmatpush1.msra.mxu0 0.0
        %1016 = vmatprep.subr.mxu0 0.0
        %1017 = vmatpush1.msra.mxu0 0.0
        %1018 = vmatprep.subr.mxu0 0.0
        %1019 = vmatpush1.msra.mxu0 0.0
        %1020 = vmatprep.subr.mxu0 0.0
        %1021 = vmatpush1.msra.mxu0 0.0
        %1022 = vmatprep.subr.mxu0 0.0
        %1023 = vmatpush1.msra.mxu0 0.0
        %1024 = vmatprep.subr.mxu0 0.0
        %1025 = vmatpush1.msra.mxu0 0.0
        %1026 = vmatprep.subr.mxu0 0.0
        %1027 = vmatpush1.msra.mxu0 0.0
        %1028 = vmatprep.subr.mxu0 0.0
        %1029 = vmatpush1.msra.mxu0 0.0
        %1030 = vmatprep.subr.mxu0 0.0
        %1031 = vmatpush1.msra.mxu0 0.0
        %1032 = vmatprep.subr.mxu0 0.0
        %1033 = vmatpush1.msra.mxu0 0.0
        %1034 = vmatprep.subr.mxu0 0.0
        %1035 = vmatpush1.msra.mxu0 0.0
        %1036 = vmatprep.subr.mxu0 0.0
        %1037 = vmatpush1.msra.mxu0 0.0
        %1038 = vmatprep.subr.mxu0 0.0
        %1039 = vmatpush1.msra.mxu0 0.0
        %1040 = vmatprep.subr.mxu0 0.0
        %1041 = vmatpush1.msra.mxu0 0.0
        %1042 = vmatprep.subr.mxu0 0.0
        %1043 = vmatpush1.msra.mxu0 0.0
        %1044 = vmatprep.subr.mxu0 0.0
        %1045 = vmatpush1.msra.mxu0 0.0
        %1046 = vmatprep.subr.mxu0 0.0
        %1047 = vmatpush1.msra.mxu0 0.0
        %1048 = vmatprep.subr.mxu0 0.0
        %1049 = vmatpush1.msra.mxu0 0.0
        %1050 = vmatprep.subr.mxu0 0.0
        %1051 = vmatpush1.msra.mxu0 0.0
        %1052 = vmatprep.subr.mxu0 0.0
        %1053 = vmatpush1.msra.mxu0 0.0
        %1054 = vmatprep.subr.mxu0 0.0
        %1055 = vmatpush1.msra.mxu0 0.0
        %1056 = vmatprep.subr.mxu0 0.0
        %1057 = vmatpush1.msra.mxu0 0.0
        %1058 = vmatprep.mubr.f32.mxu0 0.0
        %1059 = vmatmul.mubr.f32.gmra.mrb[0].mxu0 %v952
        %v1060 = vpop.f32.mrb[0].mxu0
        %v1061 = vadd.f32 %v948, %v1060
        %v1062 = vpop.f32.mrb[0].mxu0
        %1063 = vmatprep.mubr.f32.mxu0 0.0
        %1064 = vmatmul.mubr.f32.gmra.mrb[0].mxu0 %v955
        %v1065 = vpop.f32.mrb[0].mxu0
        %v1066 = vadd.f32 %v948, %v1065
        %v1067 = vpop.f32.mrb[0].mxu0
        %1068 = vmatprep.mubr.f32.mxu0 0.0
        %1069 = vmatmul.mubr.f32.gmra.mrb[0].mxu0 %v958
        %v1070 = vpop.f32.mrb[0].mxu0
        %v1071 = vadd.f32 %v948, %v1070
        %v1072 = vpop.f32.mrb[0].mxu0
        %1073 = vmatprep.mubr.f32.mxu0 0.0
        %1074 = vmatmul.mubr.f32.gmra.mrb[0].mxu0 %v961
        %v1075 = vpop.f32.mrb[0].mxu0
        %v1076 = vadd.f32 %v948, %v1075
        %v1077 = vpop.f32.mrb[0].mxu0
        %1078 = vmatprep.mubr.f32.mxu0 0.0
        %1079 = vmatmul.mubr.f32.gmra.mrb[0].mxu0 %v964
        %v1080 = vpop.f32.mrb[0].mxu0
        %v1081 = vadd.f32 %v948, %v1080
        %v1082 = vpop.f32.mrb[0].mxu0
        %1083 = vmatprep.mubr.f32.mxu0 0.0
        %1084 = vmatmul.mubr.f32.gmra.mrb[0].mxu0 %v967
        %v1085 = vpop.f32.mrb[0].mxu0
        %v1086 = vadd.f32 %v948, %v1085
        %v1087 = vpop.f32.mrb[0].mxu0
        %1088 = vmatprep.mubr.f32.mxu0 0.0
        %1089 = vmatmul.mubr.f32.gmra.mrb[0].mxu0 %v970
        %v1090 = vpop.f32.mrb[0].mxu0
        %v1091 = vadd.f32 %v948, %v1090
        %v1092 = vpop.f32.mrb[0].mxu0
        %1093 = vmatprep.mubr.f32.mxu0 0.0
        %1094 = vmatmul.mubr.f32.gmra.mrb[0].mxu0 %v973
        %v1095 = vpop.f32.mrb[0].mxu0
        %v1096 = vadd.f32 %v948, %v1095
        %v1097 = vpop.f32.mrb[0].mxu0
        %1098 = vmatprep.mubr.f32.mxu0 0.0
        %1099 = vmatmul.mubr.f32.gmra.mrb[0].mxu0 %v976
        %v1100 = vpop.f32.mrb[0].mxu0
        %v1101 = vadd.f32 %v948, %v1100
        %v1102 = vpop.f32.mrb[0].mxu0
        %1103 = vmatprep.mubr.f32.mxu0 0.0
        %1104 = vmatmul.mubr.f32.gmra.mrb[0].mxu0 %v979
        %v1105 = vpop.f32.mrb[0].mxu0
        %v1106 = vadd.f32 %v948, %v1105
        %v1107 = vpop.f32.mrb[0].mxu0
        %1108 = vmatprep.mubr.f32.mxu0 0.0
        %1109 = vmatmul.mubr.f32.gmra.mrb[0].mxu0 %v982
        %v1110 = vpop.f32.mrb[0].mxu0
        %v1111 = vadd.f32 %v948, %v1110
        %v1112 = vpop.f32.mrb[0].mxu0
        %1113 = vmatprep.mubr.f32.mxu0 0.0
        %1114 = vmatmul.mubr.f32.gmra.mrb[0].mxu0 %v985
        %v1115 = vpop.f32.mrb[0].mxu0
        %v1116 = vadd.f32 %v948, %v1115
        %v1117 = vpop.f32.mrb[0].mxu0
        %1118 = vmatprep.mubr.f32.mxu0 0.0
        %1119 = vmatmul.mubr.f32.gmra.mrb[0].mxu0 %v988
        %v1120 = vpop.f32.mrb[0].mxu0
        %v1121 = vadd.f32 %v948, %v1120
        %v1122 = vpop.f32.mrb[0].mxu0
        %1123 = vdwg.mxu0
        %vm1124 = vcmask 64512
        %1125 = vst.msk [vmem:[%s315] sm:$0xff] %vm1124, %v1061
        %1126 = vst.msk [vmem:[%s315 + $0x8] sm:$0xff] %vm1124, %v1066
        %1127 = vst.msk [vmem:[%s315 + $0x10] sm:$0xff] %vm1124, %v1071
        %1128 = vst.msk [vmem:[%s315 + $0x18] sm:$0xff] %vm1124, %v1076
        %1129 = vst.msk [vmem:[%s315 + $0x20] sm:$0xff] %vm1124, %v1081
        %1130 = vst.msk [vmem:[%s315 + $0x28] sm:$0xff] %vm1124, %v1086
        %1131 = vst.msk [vmem:[%s315 + $0x30] sm:$0xff] %vm1124, %v1091
        %1132 = vst.msk [vmem:[%s315 + $0x38] sm:$0xff] %vm1124, %v1096
        %1133 = vst.msk [vmem:[%s315 + $0x40] sm:$0xff] %vm1124, %v1101
        %1134 = vst.msk [vmem:[%s315 + $0x48] sm:$0xff] %vm1124, %v1106
        %1135 = vst.msk [vmem:[%s315 + $0x50] sm:$0xff] %vm1124, %v1111
        %1136 = vst.msk [vmem:[%s315 + $0x58] sm:$0xff] %vm1124, %v1116
        %1137 = vst.msk [vmem:[%s315 + $0x60] sm:$0xff] %vm1124, %v1121
        %s1138 = sand.u32 %s182, 1
        %s1139 = sand.u32 %s182, 1
        %s1140 = smul.addr %s1139, 104
        %s1141 = scalar_lea.vmem [#allocation6], %s1140
        // Predicated region
        $region57: #{tpu_custom_call.1} parent=47 // pred_check
          %p1142 = pneg %p192
        $region58: #{tpu_custom_call.1} parent=47 // pred_check_branch
          %1144 = sbr.rel (%p1142) target = $region60
        $region59: #{tpu_custom_call.1} parent=47 // pred_region
          %s1145 = smul.u32 13, %s22
          %s1146 = ssub.s32 25, %s1145
          %p1147 = scmp.lt.s32.totalorder %s1146, 13
          %s1148 = scalar_select %p1147, %s1146, 13
          %s1149 = smul.u32 128, %s1148
          %p1150 = scmp.ne.s32.totalorder 0, %s1149
          %s1151 = smul.addr %s1145, 8
          %s1152 = scalar_lea.vmem %s7, %s1151
          // Predicated region
          $region61: #{tpu_custom_call.1} parent=59 // pred_check
            %p1153 = pneg %p1150
          $region62: #{tpu_custom_call.1} parent=59 // pred_check_branch
            %1155 = sbr.rel (%p1153) target = $region64
          $region63: #{tpu_custom_call.1} parent=59 // pred_region
            // Predicated region
            $region65: #{tpu_custom_call.1} parent=63 // pred_check
              _
            $region66: #{tpu_custom_call.1} parent=63 // pred_check_branch
              %1157 = sbr.rel (0) target = $region68
            $region67: #{tpu_custom_call.1} parent=63 // pred_region
              // Predicated region
              $region87: #{tpu_custom_call.1} parent=67 // pred_check
                _
              $region88: #{tpu_custom_call.1} parent=67 // pred_check_branch
                %1231 = sbr.rel (0) target = $region90
              $region89: #{tpu_custom_call.1} parent=67 // pred_region
                %s1232 = sdiv.u32.pop %s1148, 13
                %s1233 = srem.u32.pop %s1148, 13
                // While loop
                $region91: #{tpu_custom_call.1} parent=89 // loop_pre_header
                  _
                $region92: #{tpu_custom_call.1} parent=89 // loop_header
                  %s1235 = sphi 0, %s1237
                  %p1236 = scmp.ge.s32.totalorder %s1235, %s1232
                  %s1240 = sphi 0, %s1271
                  %s1241 = sphi %s1141, %s1274
                  %s1242 = sphi %s1152, %s1275
                $region93: #{tpu_custom_call.1} parent=89 // loop_header_branch
                  %1239 = sbr.rel (%p1236) target = $region97
                $region94: #{tpu_custom_call.1} parent=89 // loop_body
                  %v1243 = vld [vmem:[%s1241] sm:$0xff]
                  %1244 = vst [vmem:[%s1242] sm:$0xff] %v1243
                  %v1245 = vld [vmem:[%s1241 + $0x8] sm:$0xff]
                  %1246 = vst [vmem:[%s1242 + $0x8] sm:$0xff] %v1245
                  %v1247 = vld [vmem:[%s1241 + $0x10] sm:$0xff]
                  %1248 = vst [vmem:[%s1242 + $0x10] sm:$0xff] %v1247
                  %v1249 = vld [vmem:[%s1241 + $0x18] sm:$0xff]
                  %1250 = vst [vmem:[%s1242 + $0x18] sm:$0xff] %v1249
                  %v1251 = vld [vmem:[%s1241 + $0x20] sm:$0xff]
                  %1252 = vst [vmem:[%s1242 + $0x20] sm:$0xff] %v1251
                  %v1253 = vld [vmem:[%s1241 + $0x28] sm:$0xff]
                  %1254 = vst [vmem:[%s1242 + $0x28] sm:$0xff] %v1253
                  %v1255 = vld [vmem:[%s1241 + $0x30] sm:$0xff]
                  %1256 = vst [vmem:[%s1242 + $0x30] sm:$0xff] %v1255
                  %v1257 = vld [vmem:[%s1241 + $0x38] sm:$0xff]
                  %1258 = vst [vmem:[%s1242 + $0x38] sm:$0xff] %v1257
                  %v1259 = vld [vmem:[%s1241 + $0x40] sm:$0xff]
                  %1260 = vst [vmem:[%s1242 + $0x40] sm:$0xff] %v1259
                  %v1261 = vld [vmem:[%s1241 + $0x48] sm:$0xff]
                  %1262 = vst [vmem:[%s1242 + $0x48] sm:$0xff] %v1261
                  %v1263 = vld [vmem:[%s1241 + $0x50] sm:$0xff]
                  %1264 = vst [vmem:[%s1242 + $0x50] sm:$0xff] %v1263
                  %v1265 = vld [vmem:[%s1241 + $0x58] sm:$0xff]
                  %1266 = vst [vmem:[%s1242 + $0x58] sm:$0xff] %v1265
                  %v1267 = vld [vmem:[%s1241 + $0x60] sm:$0xff]
                  %1268 = vst [vmem:[%s1242 + $0x60] sm:$0xff] %v1267
                  %s1269 = sadd.s32 1, %s1240
                  %p1270 = scmp.ge.s32.totalorder %s1269, %s1232
                  %s1271 = scalar_select %p1270, 0, %s1269
                  %s1272 = smul.u32 %s1271, 104
                  %s1273 = smul.u32 %s1271, 104
                  %s1274 = scalar_lea.vmem %s1141, %s1272 [#allocation6]
                  %s1275 = scalar_lea.vmem %s1152, %s1273
                $region95: #{tpu_custom_call.1} parent=89 // loop_footer
                  %s1237 = sadd.s32 %s1235, 1
                $region96: #{tpu_custom_call.1} parent=89 // loop_footer_branch
                  %1234 = sbr.rel target = $region92
                $region97: #{tpu_custom_call.1} parent=89 // loop_exit
                  _
                %s1276 = sdiv.u32.pop %s1148, 13
                %s1277 = srem.u32.pop %s1148, 13
                %s1278 = smul.u32 %s1276, 13
                %s1279 = smul.u32 8, %s1278
                %s1280 = scalar_lea.vmem %s1141, %s1279 [#allocation6]
                %s1281 = smul.u32 8, %s1278
                %s1282 = scalar_lea.vmem %s1152, %s1281
                // While loop
                $region98: #{tpu_custom_call.1} parent=89 // loop_pre_header
                  _
                $region99: #{tpu_custom_call.1} parent=89 // loop_header
                  %s1284 = sphi 0, %s1286
                  %p1285 = scmp.ge.s32.totalorder %s1284, %s1277
                  %s1289 = sphi 0, %s1296
                  %s1290 = sphi %s1280, %s1299
                  %s1291 = sphi %s1282, %s1300
                $region100: #{tpu_custom_call.1} parent=89 // loop_header_branch
                  %1288 = sbr.rel (%p1285) target = $region104
                $region101: #{tpu_custom_call.1} parent=89 // loop_body
                  %v1292 = vld [vmem:[%s1290] sm:$0xff]
                  %1293 = vst [vmem:[%s1291] sm:$0xff] %v1292
                  %s1294 = sadd.s32 1, %s1289
                  %p1295 = scmp.ge.s32.totalorder %s1294, %s1277
                  %s1296 = scalar_select %p1295, 0, %s1294
                  %s1297 = smul.u32 %s1296, 8
                  %s1298 = smul.u32 %s1296, 8
                  %s1299 = scalar_lea.vmem %s1280, %s1297 [#allocation6]
                  %s1300 = scalar_lea.vmem %s1282, %s1298
                $region102: #{tpu_custom_call.1} parent=89 // loop_footer
                  %s1286 = sadd.s32 %s1284, 1
                $region103: #{tpu_custom_call.1} parent=89 // loop_footer_branch
                  %1283 = sbr.rel target = $region99
                $region104: #{tpu_custom_call.1} parent=89 // loop_exit
                  _
              $region90: #{tpu_custom_call.1} parent=67 // pred_fallthru
                _
              // Predicated region
              $region105: #{tpu_custom_call.1} parent=67 // pred_check
                _
              $region106: #{tpu_custom_call.1} parent=67 // pred_check_branch
                %1302 = sbr.rel target = $region108
              $region107: #{tpu_custom_call.1} parent=67 // pred_region
                _
              $region108: #{tpu_custom_call.1} parent=67 // pred_fallthru
                _
            $region68: #{tpu_custom_call.1} parent=63 // pred_fallthru
              _
            // Predicated region
            $region69: #{tpu_custom_call.1} parent=63 // pred_check
              _
            $region70: #{tpu_custom_call.1} parent=63 // pred_check_branch
              %1159 = sbr.rel target = $region72
            $region71: #{tpu_custom_call.1} parent=63 // pred_region
              %s1161 = sdiv.u32.pop %s1148, 13
              %s1162 = srem.u32.pop %s1148, 13
              // While loop
              $region73: #{tpu_custom_call.1} parent=71 // loop_pre_header
                _
              $region74: #{tpu_custom_call.1} parent=71 // loop_header
                %s1164 = sphi 0, %s1166
                %p1165 = scmp.ge.s32.totalorder %s1164, %s1161
                %s1169 = sphi 0, %s1200
                %s1170 = sphi %s1141, %s1203
                %s1171 = sphi %s1152, %s1204
              $region75: #{tpu_custom_call.1} parent=71 // loop_header_branch
                %1168 = sbr.rel (%p1165) target = $region79
              $region76: #{tpu_custom_call.1} parent=71 // loop_body
                %v1172 = vld [vmem:[%s1170] sm:$0xff]
                %1173 = vst [vmem:[%s1171] sm:$0xff] %v1172
                %v1174 = vld [vmem:[%s1170 + $0x8] sm:$0xff]
                %1175 = vst [vmem:[%s1171 + $0x8] sm:$0xff] %v1174
                %v1176 = vld [vmem:[%s1170 + $0x10] sm:$0xff]
                %1177 = vst [vmem:[%s1171 + $0x10] sm:$0xff] %v1176
                %v1178 = vld [vmem:[%s1170 + $0x18] sm:$0xff]
                %1179 = vst [vmem:[%s1171 + $0x18] sm:$0xff] %v1178
                %v1180 = vld [vmem:[%s1170 + $0x20] sm:$0xff]
                %1181 = vst [vmem:[%s1171 + $0x20] sm:$0xff] %v1180
                %v1182 = vld [vmem:[%s1170 + $0x28] sm:$0xff]
                %1183 = vst [vmem:[%s1171 + $0x28] sm:$0xff] %v1182
                %v1184 = vld [vmem:[%s1170 + $0x30] sm:$0xff]
                %1185 = vst [vmem:[%s1171 + $0x30] sm:$0xff] %v1184
                %v1186 = vld [vmem:[%s1170 + $0x38] sm:$0xff]
                %1187 = vst [vmem:[%s1171 + $0x38] sm:$0xff] %v1186
                %v1188 = vld [vmem:[%s1170 + $0x40] sm:$0xff]
                %1189 = vst [vmem:[%s1171 + $0x40] sm:$0xff] %v1188
                %v1190 = vld [vmem:[%s1170 + $0x48] sm:$0xff]
                %1191 = vst [vmem:[%s1171 + $0x48] sm:$0xff] %v1190
                %v1192 = vld [vmem:[%s1170 + $0x50] sm:$0xff]
                %1193 = vst [vmem:[%s1171 + $0x50] sm:$0xff] %v1192
                %v1194 = vld [vmem:[%s1170 + $0x58] sm:$0xff]
                %1195 = vst [vmem:[%s1171 + $0x58] sm:$0xff] %v1194
                %v1196 = vld [vmem:[%s1170 + $0x60] sm:$0xff]
                %1197 = vst [vmem:[%s1171 + $0x60] sm:$0xff] %v1196
                %s1198 = sadd.s32 1, %s1169
                %p1199 = scmp.ge.s32.totalorder %s1198, %s1161
                %s1200 = scalar_select %p1199, 0, %s1198
                %s1201 = smul.u32 %s1200, 104
                %s1202 = smul.u32 %s1200, 104
                %s1203 = scalar_lea.vmem %s1141, %s1201 [#allocation6]
                %s1204 = scalar_lea.vmem %s1152, %s1202
              $region77: #{tpu_custom_call.1} parent=71 // loop_footer
                %s1166 = sadd.s32 %s1164, 1
              $region78: #{tpu_custom_call.1} parent=71 // loop_footer_branch
                %1163 = sbr.rel target = $region74
              $region79: #{tpu_custom_call.1} parent=71 // loop_exit
                _
              %s1205 = sdiv.u32.pop %s1148, 13
              %s1206 = srem.u32.pop %s1148, 13
              %s1207 = smul.u32 %s1205, 13
              %s1208 = smul.u32 8, %s1207
              %s1209 = scalar_lea.vmem %s1141, %s1208 [#allocation6]
              %s1210 = smul.u32 8, %s1207
              %s1211 = scalar_lea.vmem %s1152, %s1210
              // While loop
              $region80: #{tpu_custom_call.1} parent=71 // loop_pre_header
                _
              $region81: #{tpu_custom_call.1} parent=71 // loop_header
                %s1213 = sphi 0, %s1215
                %p1214 = scmp.ge.s32.totalorder %s1213, %s1206
                %s1218 = sphi 0, %s1225
                %s1219 = sphi %s1209, %s1228
                %s1220 = sphi %s1211, %s1229
              $region82: #{tpu_custom_call.1} parent=71 // loop_header_branch
                %1217 = sbr.rel (%p1214) target = $region86
              $region83: #{tpu_custom_call.1} parent=71 // loop_body
                %v1221 = vld [vmem:[%s1219] sm:$0xff]
                %1222 = vst [vmem:[%s1220] sm:$0xff] %v1221
                %s1223 = sadd.s32 1, %s1218
                %p1224 = scmp.ge.s32.totalorder %s1223, %s1206
                %s1225 = scalar_select %p1224, 0, %s1223
                %s1226 = smul.u32 %s1225, 8
                %s1227 = smul.u32 %s1225, 8
                %s1228 = scalar_lea.vmem %s1209, %s1226 [#allocation6]
                %s1229 = scalar_lea.vmem %s1211, %s1227
              $region84: #{tpu_custom_call.1} parent=71 // loop_footer
                %s1215 = sadd.s32 %s1213, 1
              $region85: #{tpu_custom_call.1} parent=71 // loop_footer_branch
                %1212 = sbr.rel target = $region81
              $region86: #{tpu_custom_call.1} parent=71 // loop_exit
                _
            $region72: #{tpu_custom_call.1} parent=63 // pred_fallthru
              _
          $region64: #{tpu_custom_call.1} parent=59 // pred_fallthru
            _
          %1303 = vnop
        $region60: #{tpu_custom_call.1} parent=47 // pred_fallthru
          _
      $region48: #{tpu_custom_call.1} parent=5 // pred_fallthru
        _
      %p1304 = scmp.le.s32.totalorder 2, %s17
      // Predicated region
      $region109: #{tpu_custom_call.1} parent=5 // pred_check
        %p1305 = pneg %p1304
      $region110: #{tpu_custom_call.1} parent=5 // pred_check_branch
        %1307 = sbr.rel (%p1305) target = $region112
      $region111: #{tpu_custom_call.1} parent=5 // pred_region
        %s1308 = ssub.s32 %s17, 2
        // Predicated region
        $region113: #{tpu_custom_call.1} parent=111 // pred_check
          %p1309 = pneg %p198
        $region114: #{tpu_custom_call.1} parent=111 // pred_check_branch
          %1311 = sbr.rel (%p1309) target = $region116
        $region115: #{tpu_custom_call.1} parent=111 // pred_region
          %s1312 = sand.u32 %s183, 1
          %s1313 = sand.u32 %s183, 1
          %s1314 = smul.addr %s1313, 104
          %s1315 = scalar_lea.vmem [#allocation6], %s1314
        $region116: #{tpu_custom_call.1} parent=111 // pred_fallthru
          _
      $region112: #{tpu_custom_call.1} parent=5 // pred_fallthru
        _
    $region6: #{tpu_custom_call.1} parent=1 // loop_footer
      %s21 = sadd.s32 1, %s17
    $region7: #{tpu_custom_call.1} parent=1 // loop_footer_branch
      %16 = sbr.rel target = $region3
    $region8: #{tpu_custom_call.1} parent=1 // loop_exit
      _
    %1316 = vsyncpa [#allocation3], 1
    %s1317 = scalar_lea.sflag [#allocation3], 1
    %1318 = vsyncpa %s1317, 1
    %1319 = vsyncpa [#allocation5], 1

</llo_original>
